<compile_context>
chip_gen: v7x
topology: tpu7x:2x2x1
jax: 0.10.0
libtpu: 0.0.40
codegen_flags: <defaults>
</compile_context>

<pallas_src>
import jax
import jax.numpy as jnp
from jax.experimental import pallas as pl
from jax.experimental.pallas import tpu as pltpu


def _make_fused_kernel(input_dim, step, compute_dtype):
    D = input_dim
    h = step  # final_time / num_layers (static python float)

    def kernel(x0_ref, w1t_ref, b1_ref, w1a_ref, m_ref, out_ref, state_ref):
        l = pl.program_id(1)  # layer / time-step axis (innermost, "arbitrary")

        # Initialize the VMEM-resident state from the input on the first step.
        @pl.when(l == 0)
        def _():
            state_ref[...] = x0_ref[...]

        state = state_ref[...]                       # (Bt, 2D) f32
        y = state[:, :D]                             # (Bt, D)
        z = state[:, D:]                             # (Bt, D)

        w1t = w1t_ref[...].astype(compute_dtype)     # (D, H)  = W1.T
        w1a = w1a_ref[...].astype(compute_dtype)     # (H, D)  = W1 * alpha
        m = m_ref[...].astype(compute_dtype)         # (D, D)  = Wv.T @ Wv
        b1 = b1_ref[...]                             # (1, H)

        # mlp: Linear(D,H) + ReLU -> (Bt, H)
        a = jnp.maximum(
            jnp.dot(y.astype(compute_dtype), w1t,
                    preferred_element_type=jnp.float32) + b1, 0.0)
        # dz = -(mlp(y) @ W1) * alpha  ==  -mlp(y) @ (W1 * alpha)
        dz = -jnp.dot(a.astype(compute_dtype), w1a,
                      preferred_element_type=jnp.float32)
        z2 = z + h * dz
        # dy = (z2 @ Wv.T) @ Wv  ==  z2 @ (Wv.T @ Wv)
        dy = jnp.dot(z2.astype(compute_dtype), m,
                     preferred_element_type=jnp.float32)
        y2 = y + h * dy

        # Carry state for the next layer and emit this layer's state
        # (new = x_ + h*[dy, dz] == [y + h*dy, z + h*dz]).
        state_ref[:, :D] = y2
        state_ref[:, D:] = z2
        out_ref[0, :, :D] = y2
        out_ref[0, :, D:] = z2

    return kernel


def hamil_block_forward(x_list, w1, b1, alpha, wv, *, input_dim, num_layers,
                        final_time=1.0, num_steps=None,
                        compute_dtype=jnp.float32):
    """Fused Pallas HamilBlock.

    Applies the block `num_steps` times (default: num_layers) in ONE
    pallas_call and appends every intermediate state, which is exactly what
    calling the PyTorch module's forward `num_steps` times does.
    `num_steps=1` reproduces a single module forward.
    """
    x0 = x_list[-1]
    B = x0.shape[0]
    D = input_dim
    H = w1.shape[0]
    L = num_layers if num_steps is None else int(num_steps)
    step = float(final_time) / float(num_layers)
    # TODO(synk): step is baked in statically; pass via SMEM if it must vary at runtime.

    # One-time weight prep outside the hot loop.
    w1t = jnp.asarray(w1.T, jnp.float32)                 # (D, H)
    w1a = (w1 * alpha[None, :]).astype(jnp.float32)      # (H, D) alpha folded
    m = (wv.T @ wv).astype(jnp.float32)                  # (D, D)
    b1_2d = b1.reshape(1, H).astype(jnp.float32)

    kernel = _make_fused_kernel(D, step, compute_dtype)

    bt = B              # single batch tile at these sizes
    nb = B // bt

    flops = int(L * B * (4 * D * H + 2 * D * D))
    bytes_accessed = int(4 * (B * 2 * D + 2 * D * H + H + D * D
                              + L * B * 2 * D))

    states = pl.pallas_call(
        kernel,
        out_shape=jax.ShapeDtypeStruct((L, B, 2 * D), jnp.float32),
        grid_spec=pltpu.PrefetchScalarGridSpec(
            num_scalar_prefetch=0,
            grid=(nb, L),   # batch tiles (parallel) x layers (carried state)
            in_specs=[
                pl.BlockSpec((bt, 2 * D), lambda b, l: (b, 0)),   # x0
                pl.BlockSpec((D, H), lambda b, l: (0, 0)),        # W1.T
                pl.BlockSpec((1, H), lambda b, l: (0, 0)),        # b1
                pl.BlockSpec((H, D), lambda b, l: (0, 0)),        # W1*alpha
                pl.BlockSpec((D, D), lambda b, l: (0, 0)),        # Wv.T@Wv
            ],
            out_specs=pl.BlockSpec((1, bt, 2 * D), lambda b, l: (l, b, 0)),
            scratch_shapes=[pltpu.VMEM((bt, 2 * D), jnp.float32)],
        ),
        compiler_params=pltpu.CompilerParams(
            dimension_semantics=("parallel", "arbitrary")),
        cost_estimate=pl.CostEstimate(
            flops=flops, transcendentals=0, bytes_accessed=bytes_accessed),
    )(x0, w1t, b1_2d, w1a, m)

    return list(x_list) + [states[i] for i in range(L)]


def hamil_block_reference(x_list, w1, b1, alpha, wv, *, input_dim,
                          num_layers, final_time=1.0):
    """Pure-JAX reference, mirrors the PyTorch forward line by line."""
    D = input_dim
    step = float(final_time) / float(num_layers)
    x_ = x_list[-1]
    y = x_[:, :D]
    z = x_[:, D:2 * D]
    dz = -jax.nn.relu(y @ w1.T + b1)
    dz = dz @ w1
    dz = dz @ jnp.diag(alpha)
    z = z + step * dz
    dy = z @ wv.T
    dy = dy @ wv
    out = jnp.concatenate([dy, dz], axis=1)
    return list(x_list) + [x_ + step * out]


if __name__ == "__main__":
    B, D, H = 8, 16, 32          # batch, input_dim, hidden_dim
    num_layers = 4
    final_time = 1.0

    key = jax.random.PRNGKey(0)
    k1, k2, k3, k4 = jax.random.split(key, 4)

    # deterministic parameter init (module shapes): W1 (H, D), b1 (H,),
    # alpha (D,) initialized to ones as in __init__, Wv (D, D) no bias.
    w1 = jax.random.normal(k1, (H, D), jnp.float32) * 0.1
    b1 = jax.random.normal(k2, (H,), jnp.float32) * 0.1
    alpha = jnp.ones((D,), jnp.float32)
    wv = jax.random.normal(k3, (D, D), jnp.float32) * 0.1

    # state list; last element has shape (B, 2*D)
    x0 = jax.random.normal(k4, (B, 2 * D), jnp.float32)
    x_list = [x0]

    # ---- fused path: equivalent to calling module.forward num_layers times ----
    out_list = hamil_block_forward(
        x_list, w1, b1, alpha, wv,
        input_dim=D, num_layers=num_layers, final_time=final_time,
        num_steps=num_layers)
    jax.block_until_ready(out_list[-1])

    ref_list = list(x_list)
    for _ in range(num_layers):
        ref_list = hamil_block_reference(
            ref_list, w1, b1, alpha, wv,
            input_dim=D, num_layers=num_layers, final_time=final_time)

    assert len(out_list) == len(ref_list) == 1 + num_layers
    for got, want in zip(out_list, ref_list):
        assert got.shape == (B, 2 * D)
        assert jnp.allclose(got, want, atol=1e-4, rtol=1e-4), "fused mismatch"

    # ---- single step: exact original module forward semantics ----
    one_list = hamil_block_forward(
        x_list, w1, b1, alpha, wv,
        input_dim=D, num_layers=num_layers, final_time=final_time,
        num_steps=1)
    ref_one = hamil_block_reference(
        x_list, w1, b1, alpha, wv,
        input_dim=D, num_layers=num_layers, final_time=final_time)
    jax.block_until_ready(one_list[-1])
    assert jnp.allclose(one_list[-1], ref_one[-1], atol=1e-4, rtol=1e-4), \
        "single-step mismatch"

    print("KERNEL_OK")
</pallas_src>

<mosaic_0001>
module attributes {stable_mosaic.version = 11 : i64} {
  func.func @kernel(%arg0: i32, %arg1: i32, %arg2: memref<8x32xf32, #tpu.memory_space<vmem>>, %arg3: memref<16x32xf32, #tpu.memory_space<vmem>>, %arg4: memref<1x32xf32, #tpu.memory_space<vmem>>, %arg5: memref<32x16xf32, #tpu.memory_space<vmem>>, %arg6: memref<16x16xf32, #tpu.memory_space<vmem>>, %arg7: memref<1x8x32xf32, #tpu.memory_space<vmem>>, %arg8: memref<8x32xf32, #tpu.memory_space<vmem>>) attributes {dimension_semantics = [#tpu.dimension_semantics<parallel>, #tpu.dimension_semantics<arbitrary>], iteration_bounds = array<i64: 1, 4>, scalar_prefetch = 0 : i64, scratch_operands = 1 : i64, tpu.core_type = #tpu.core_type<tc>, window_params = [{transform_indices = @transform_0, window_bounds = array<i64: 8, 32>}, {pipeline_mode = #tpu.pipeline_mode<synchronous>, transform_indices = @transform_1, window_bounds = array<i64: 16, 32>}, {pipeline_mode = #tpu.pipeline_mode<synchronous>, transform_indices = @transform_2, window_bounds = array<i64: 1, 32>}, {pipeline_mode = #tpu.pipeline_mode<synchronous>, transform_indices = @transform_3, window_bounds = array<i64: 32, 16>}, {pipeline_mode = #tpu.pipeline_mode<synchronous>, transform_indices = @transform_4, window_bounds = array<i64: 16, 16>}, {transform_indices = @transform_5, window_bounds = array<i64: 1, 8, 32>}]} {
    %c0_i32 = arith.constant 0 : i32
    %0 = arith.cmpi eq, %arg1, %c0_i32 : i32
    %1 = arith.extui %0 : i1 to i32
    %c0_i32_0 = arith.constant 0 : i32
    %2 = arith.cmpi ne, %1, %c0_i32_0 : i32
    scf.if %2 {
      %c0_25 = arith.constant 0 : index
      %c0_26 = arith.constant 0 : index
      %33 = vector.load %arg2[%c0_25, %c0_26] : memref<8x32xf32, #tpu.memory_space<vmem>>, vector<8x32xf32>
      %c0_27 = arith.constant 0 : index
      %c0_28 = arith.constant 0 : index
      %34 = vector.load %arg8[%c0_27, %c0_28] : memref<8x32xf32, #tpu.memory_space<vmem>>, vector<8x32xf32>
      tpu.vector_store %arg8[%c0_27, %c0_28], %33 {strides = array<i32>} : memref<8x32xf32, #tpu.memory_space<vmem>>, vector<8x32xf32>,
    } else {
    }
    %c0 = arith.constant 0 : index
    %c0_1 = arith.constant 0 : index
    %3 = vector.load %arg8[%c0, %c0_1] : memref<8x32xf32, #tpu.memory_space<vmem>>, vector<8x32xf32>
    %4 = vector.extract_strided_slice %3 {offsets = [0, 0], sizes = [8, 16], strides = [1, 1]} : vector<8x32xf32> to vector<8x16xf32>
    %5 = vector.extract_strided_slice %3 {offsets = [0, 16], sizes = [8, 16], strides = [1, 1]} : vector<8x32xf32> to vector<8x16xf32>
    %c0_2 = arith.constant 0 : index
    %c0_3 = arith.constant 0 : index
    %6 = vector.load %arg3[%c0_2, %c0_3] : memref<16x32xf32, #tpu.memory_space<vmem>>, vector<16x32xf32>
    %c0_4 = arith.constant 0 : index
    %c0_5 = arith.constant 0 : index
    %7 = vector.load %arg5[%c0_4, %c0_5] : memref<32x16xf32, #tpu.memory_space<vmem>>, vector<32x16xf32>
    %c0_6 = arith.constant 0 : index
    %c0_7 = arith.constant 0 : index
    %8 = vector.load %arg6[%c0_6, %c0_7] : memref<16x16xf32, #tpu.memory_space<vmem>>, vector<16x16xf32>
    %c0_8 = arith.constant 0 : index
    %c0_9 = arith.constant 0 : index
    %9 = vector.load %arg4[%c0_8, %c0_9] : memref<1x32xf32, #tpu.memory_space<vmem>>, vector<1x32xf32>
    %cst = arith.constant dense<0.000000e+00> : vector<8x32xf32>
    %10 = tpu.matmul %4, %6, %cst {dimension_numbers = #tpu.dot_dimension_numbers<[1], [0], [0], [1], [0, 0, 1, 1], [], []>} : vector<8x16xf32>, vector<16x32xf32>, vector<8x32xf32> -> vector<8x32xf32>
    %11 = vector.broadcast %9 : vector<1x32xf32> to vector<8x32xf32>
    %12 = arith.addf %10, %11 : vector<8x32xf32>
    %cst_10 = arith.constant 0.000000e+00 : f32
    %13 = vector.broadcast %cst_10 : f32 to vector<8x32xf32>
    %14 = arith.maximumf %12, %13 : vector<8x32xf32>
    %cst_11 = arith.constant dense<0.000000e+00> : vector<8x16xf32>
    %15 = tpu.matmul %14, %7, %cst_11 {dimension_numbers = #tpu.dot_dimension_numbers<[1], [0], [0], [1], [0, 0, 1, 1], [], []>} : vector<8x32xf32>, vector<32x16xf32>, vector<8x16xf32> -> vector<8x16xf32>
    %cst_12 = arith.constant 0.000000e+00 : f32
    %16 = vector.broadcast %cst_12 : f32 to vector<8x16xf32>
    %17 = arith.subf %16, %15 : vector<8x16xf32>
    %cst_13 = arith.constant 2.500000e-01 : f32
    %18 = vector.broadcast %cst_13 : f32 to vector<8x16xf32>
    %19 = arith.mulf %18, %17 : vector<8x16xf32>
    %20 = arith.addf %5, %19 : vector<8x16xf32>
    %cst_14 = arith.constant dense<0.000000e+00> : vector<8x16xf32>
    %21 = tpu.matmul %20, %8, %cst_14 {dimension_numbers = #tpu.dot_dimension_numbers<[1], [0], [0], [1], [0, 0, 1, 1], [], []>} : vector<8x16xf32>, vector<16x16xf32>, vector<8x16xf32> -> vector<8x16xf32>
    %cst_15 = arith.constant 2.500000e-01 : f32
    %22 = vector.broadcast %cst_15 : f32 to vector<8x16xf32>
    %23 = arith.mulf %22, %21 : vector<8x16xf32>
    %24 = arith.addf %4, %23 : vector<8x16xf32>
    %c0_16 = arith.constant 0 : index
    %c0_17 = arith.constant 0 : index
    %25 = vector.load %arg8[%c0_16, %c0_17] : memref<8x32xf32, #tpu.memory_space<vmem>>, vector<8x16xf32>
    tpu.vector_store %arg8[%c0_16, %c0_17], %24 {strides = array<i32>} : memref<8x32xf32, #tpu.memory_space<vmem>>, vector<8x16xf32>,
    %c0_18 = arith.constant 0 : index
    %c16 = arith.constant 16 : index
    %26 = vector.load %arg8[%c0_18, %c16] : memref<8x32xf32, #tpu.memory_space<vmem>>, vector<8x16xf32>
    tpu.vector_store %arg8[%c0_18, %c16], %20 {strides = array<i32>} : memref<8x32xf32, #tpu.memory_space<vmem>>, vector<8x16xf32>,
    %c0_19 = arith.constant 0 : index
    %c0_20 = arith.constant 0 : index
    %c0_21 = arith.constant 0 : index
    %27 = vector.load %arg7[%c0_19, %c0_20, %c0_21] : memref<1x8x32xf32, #tpu.memory_space<vmem>>, vector<1x8x16xf32>
    %28 = vector.shape_cast %27 : vector<1x8x16xf32> to vector<8x16xf32>
    %29 = vector.shape_cast %24 : vector<8x16xf32> to vector<1x8x16xf32>
    tpu.vector_store %arg7[%c0_19, %c0_20, %c0_21], %29 {strides = array<i32>} : memref<1x8x32xf32, #tpu.memory_space<vmem>>, vector<1x8x16xf32>,
    %c0_22 = arith.constant 0 : index
    %c0_23 = arith.constant 0 : index
    %c16_24 = arith.constant 16 : index
    %30 = vector.load %arg7[%c0_22, %c0_23, %c16_24] : memref<1x8x32xf32, #tpu.memory_space<vmem>>, vector<1x8x16xf32>
    %31 = vector.shape_cast %30 : vector<1x8x16xf32> to vector<8x16xf32>
    %32 = vector.shape_cast %20 : vector<8x16xf32> to vector<1x8x16xf32>
    tpu.vector_store %arg7[%c0_22, %c0_23, %c16_24], %32 {strides = array<i32>} : memref<1x8x32xf32, #tpu.memory_space<vmem>>, vector<1x8x16xf32>,
    return
  }
  func.func @transform_0(%arg0: i32, %arg1: i32) -> (i32, i32) {
    %c0_i32 = arith.constant 0 : i32
    %c0_i32_0 = arith.constant 0 : i32
    return %arg0, %c0_i32 : i32, i32
  }
  func.func @transform_1(%arg0: i32, %arg1: i32) -> (i32, i32) {
    %c0_i32 = arith.constant 0 : i32
    %c0_i32_0 = arith.constant 0 : i32
    %c0_i32_1 = arith.constant 0 : i32
    return %c0_i32, %c0_i32_0 : i32, i32
  }
  func.func @transform_2(%arg0: i32, %arg1: i32) -> (i32, i32) {
    %c0_i32 = arith.constant 0 : i32
    %c0_i32_0 = arith.constant 0 : i32
    %c0_i32_1 = arith.constant 0 : i32
    return %c0_i32, %c0_i32_0 : i32, i32
  }
  func.func @transform_3(%arg0: i32, %arg1: i32) -> (i32, i32) {
    %c0_i32 = arith.constant 0 : i32
    %c0_i32_0 = arith.constant 0 : i32
    %c0_i32_1 = arith.constant 0 : i32
    return %c0_i32, %c0_i32_0 : i32, i32
  }
  func.func @transform_4(%arg0: i32, %arg1: i32) -> (i32, i32) {
    %c0_i32 = arith.constant 0 : i32
    %c0_i32_0 = arith.constant 0 : i32
    %c0_i32_1 = arith.constant 0 : i32
    return %c0_i32, %c0_i32_0 : i32, i32
  }
  func.func @transform_5(%arg0: i32, %arg1: i32) -> (i32, i32, i32) {
    %c0_i32 = arith.constant 0 : i32
    %c0_i32_0 = arith.constant 0 : i32
    return %arg1, %arg0, %c0_i32 : i32, i32, i32
  }
}

</mosaic_0001>

<llo_original>
// kernel: tpu_custom_call.1
$region0: #{tpu_custom_call.1}
  #allocation0 [shape = 'u32[]', space=smem, size = 0x4, offset = 0x4, fixed_abs, tag = 'smem constant byte address 0x4 - core index']
  #allocation1 [shape = 'u32[144,128]{1,0:T(1,128)}', space=vmem, size = 0x12000, scoped, tag = 'internal scratch']
  #allocation2 [shape = 'f32[8,32]{1,0:T(8,128)}', space=vmem, size = 0x1000, scoped, tag = 'scratch operand']
  %s0 = inlined_call_operand.vmem [shape: f32[8,32], index: 0, kind: input, shape index: {}]
  %s1 = inlined_call_operand.vmem [shape: f32[16,32], index: 1, kind: input, shape index: {}]
  %s2 = inlined_call_operand.vmem [shape: f32[1,32], index: 2, kind: input, shape index: {}]
  %s3 = inlined_call_operand.vmem [shape: f32[32,16], index: 3, kind: input, shape index: {}]
  %s4 = inlined_call_operand.vmem [shape: f32[16,16], index: 4, kind: input, shape index: {}]
  %s5 = inlined_call_operand.hbm [shape: f32[4,8,32], index: 5, kind: output, shape index: {}]
  %s6 = sld [smem:[#allocation0]]
  $region57: #{tpu_custom_call.1} parent=0
    _
  %s8 = ssub.s32 1, %s6
  %s9 = scalar_select 0, %s8, %s6
  $region1: #{tpu_custom_call.1} parent=0
    #allocation3 [shape = 'u8[8192]{0}', space=vmem, size = 0x2000, scoped, tag = 'output window, operand 0']
    #allocation4 [shape = 's32[2]{0}', space=sflag, size = 0x8, scoped, tag = 'scoped memory for tpu_custom_call.1']
    %10 = vsyncpa [#allocation4], 0
    %s11 = scalar_lea.sflag [#allocation4], 1
    %12 = vsyncpa %s11, 0
    loop: start=0, step=1, limit=6
    $region2: #{tpu_custom_call.1} parent=1 // loop_pre_header
      _
    $region3: #{tpu_custom_call.1} parent=1 // loop_header
      %s14 = sphi 0, %s18
      %p15 = scmp.ge.s32.totalorder %s14, 6
      %s21 = sphi 0, %s33
      %s22 = sphi 0, %s29
      %s23 = sphi 0, %s21
      %s24 = sphi 0, %s22
      %s25 = sphi 0, %s23
      %s26 = sphi 0, %s24
      %s36 = sphi 0, %s38
      %s39 = sphi 0, %s36
      %s40 = sphi 0, %s39
      %s56 = sphi 0, %s40
      %s60 = sphi 0, %s60
      %s62 = sphi 0, %s60
      %s63 = sphi 0, %s62
      %s77 = sphi 0, %s63
      %s81 = sphi 0, %s81
      %s83 = sphi 0, %s81
      %s84 = sphi 0, %s83
      %s98 = sphi 0, %s84
      %s102 = sphi 0, %s102
      %s104 = sphi 0, %s102
      %s105 = sphi 0, %s104
      %s119 = sphi 0, %s105
      %s123 = sphi 0, %s123
      %s125 = sphi 0, %s123
      %s126 = sphi 0, %s125
      %s140 = sphi 0, %s126
      %s148 = sphi 0, %s150
      %s151 = sphi 0, %s148
      %s152 = sphi 0, %s151
      %s168 = sphi 0, %s152
    $region4: #{tpu_custom_call.1} parent=1 // loop_header_branch
      %17 = sbr.rel (%p15) target = $region8
    $region5: #{tpu_custom_call.1} parent=1 // loop_body
      %s19 = ssub.s32 %s14, 1
      %s20 = ssub.s32 %s14, 2
      %s27 = sadd.s32 1, %s22
      %p28 = scmp.ge.s32.totalorder %s27, 4
      %s29 = scalar_select %p28, 0, %s27
      %s30 = sadd.s32 1, %s21
      %s31 = scalar_select %p28, %s30, %s21
      %p32 = scmp.ge.s32.totalorder %s31, 1
      %s33 = scalar_select %p32, 0, %s31
      %s34 = ssub.s32 %s21, %s33
      %p35 = scmp.eq.s32.totalorder %s34, 0
      %s37 = sadd.s32 %s36, 1
      %s38 = scalar_select %p35, %s36, %s37
      %p41 = pneg %p35
      %p42 = scmp.eq.s32.totalorder %s14, 3
      %p43 = por %p41, %p42
      %p44 = scmp.ne.s32.totalorder %s36, %s39
      %p45 = scmp.eq.s32.totalorder %s14, 0
      %p46 = por %p44, %p45
      %p47 = scmp.ne.s32.totalorder %s36, %s39
      %p48 = scmp.eq.s32.totalorder %s19, 3
      %p49 = por %p47, %p48
      %p50 = scmp.ne.s32.totalorder %s39, %s40
      %p51 = scmp.eq.s32.totalorder %s19, 0
      %p52 = por %p50, %p51
      %p53 = scmp.ne.s32.totalorder %s39, %s40
      %p54 = scmp.eq.s32.totalorder %s20, 3
      %p55 = por %p53, %p54
      %p57 = scmp.ne.s32.totalorder %s40, %s56
      %p58 = scmp.eq.s32.totalorder %s20, 0
      %p59 = por %p57, %p58
      %s61 = sadd.s32 %s60, 1
      %p64 = scmp.eq.s32.totalorder %s14, 3
      %p65 = scmp.ne.s32.totalorder %s60, %s62
      %p66 = scmp.eq.s32.totalorder %s14, 0
      %p67 = por %p65, %p66
      %p68 = scmp.ne.s32.totalorder %s60, %s62
      %p69 = scmp.eq.s32.totalorder %s19, 3
      %p70 = por %p68, %p69
      %p71 = scmp.ne.s32.totalorder %s62, %s63
      %p72 = scmp.eq.s32.totalorder %s19, 0
      %p73 = por %p71, %p72
      %p74 = scmp.ne.s32.totalorder %s62, %s63
      %p75 = scmp.eq.s32.totalorder %s20, 3
      %p76 = por %p74, %p75
      %p78 = scmp.ne.s32.totalorder %s63, %s77
      %p79 = scmp.eq.s32.totalorder %s20, 0
      %p80 = por %p78, %p79
      %s82 = sadd.s32 %s81, 1
      %p85 = scmp.eq.s32.totalorder %s14, 3
      %p86 = scmp.ne.s32.totalorder %s81, %s83
      %p87 = scmp.eq.s32.totalorder %s14, 0
      %p88 = por %p86, %p87
      %p89 = scmp.ne.s32.totalorder %s81, %s83
      %p90 = scmp.eq.s32.totalorder %s19, 3
      %p91 = por %p89, %p90
      %p92 = scmp.ne.s32.totalorder %s83, %s84
      %p93 = scmp.eq.s32.totalorder %s19, 0
      %p94 = por %p92, %p93
      %p95 = scmp.ne.s32.totalorder %s83, %s84
      %p96 = scmp.eq.s32.totalorder %s20, 3
      %p97 = por %p95, %p96
      %p99 = scmp.ne.s32.totalorder %s84, %s98
      %p100 = scmp.eq.s32.totalorder %s20, 0
      %p101 = por %p99, %p100
      %s103 = sadd.s32 %s102, 1
      %p106 = scmp.eq.s32.totalorder %s14, 3
      %p107 = scmp.ne.s32.totalorder %s102, %s104
      %p108 = scmp.eq.s32.totalorder %s14, 0
      %p109 = por %p107, %p108
      %p110 = scmp.ne.s32.totalorder %s102, %s104
      %p111 = scmp.eq.s32.totalorder %s19, 3
      %p112 = por %p110, %p111
      %p113 = scmp.ne.s32.totalorder %s104, %s105
      %p114 = scmp.eq.s32.totalorder %s19, 0
      %p115 = por %p113, %p114
      %p116 = scmp.ne.s32.totalorder %s104, %s105
      %p117 = scmp.eq.s32.totalorder %s20, 3
      %p118 = por %p116, %p117
      %p120 = scmp.ne.s32.totalorder %s105, %s119
      %p121 = scmp.eq.s32.totalorder %s20, 0
      %p122 = por %p120, %p121
      %s124 = sadd.s32 %s123, 1
      %p127 = scmp.eq.s32.totalorder %s14, 3
      %p128 = scmp.ne.s32.totalorder %s123, %s125
      %p129 = scmp.eq.s32.totalorder %s14, 0
      %p130 = por %p128, %p129
      %p131 = scmp.ne.s32.totalorder %s123, %s125
      %p132 = scmp.eq.s32.totalorder %s19, 3
      %p133 = por %p131, %p132
      %p134 = scmp.ne.s32.totalorder %s125, %s126
      %p135 = scmp.eq.s32.totalorder %s19, 0
      %p136 = por %p134, %p135
      %p137 = scmp.ne.s32.totalorder %s125, %s126
      %p138 = scmp.eq.s32.totalorder %s20, 3
      %p139 = por %p137, %p138
      %p141 = scmp.ne.s32.totalorder %s126, %s140
      %p142 = scmp.eq.s32.totalorder %s20, 0
      %p143 = por %p141, %p142
      %s144 = ssub.s32 %s22, %s29
      %s145 = ssub.s32 %s21, %s33
      %s146 = sor.u32 %s144, %s145
      %p147 = scmp.eq.s32.totalorder %s146, 0
      %s149 = sadd.s32 %s148, 1
      %s150 = scalar_select %p147, %s148, %s149
      %p153 = pneg %p147
      %p154 = scmp.eq.s32.totalorder %s14, 3
      %p155 = por %p153, %p154
      %p156 = scmp.ne.s32.totalorder %s148, %s151
      %p157 = scmp.eq.s32.totalorder %s14, 0
      %p158 = por %p156, %p157
      %p159 = scmp.ne.s32.totalorder %s148, %s151
      %p160 = scmp.eq.s32.totalorder %s19, 3
      %p161 = por %p159, %p160
      %p162 = scmp.ne.s32.totalorder %s151, %s152
      %p163 = scmp.eq.s32.totalorder %s19, 0
      %p164 = por %p162, %p163
      %p165 = scmp.ne.s32.totalorder %s151, %s152
      %p166 = scmp.eq.s32.totalorder %s20, 3
      %p167 = por %p165, %p166
      %p169 = scmp.ne.s32.totalorder %s152, %s168
      %p170 = scmp.eq.s32.totalorder %s20, 0
      %p171 = por %p169, %p170
      %p172 = scmp.le.s32.totalorder 1, %s14
      %p173 = scmp.lt.s32.totalorder %s14, 5
      %p174 = pnand %p172, %p173
      %p175 = pneg %p174
      // Predicated region
      $region9: #{tpu_custom_call.1} parent=5 // pred_check
        _
      $region10: #{tpu_custom_call.1} parent=5 // pred_check_branch
        %177 = sbr.rel (%p174) target = $region12
      $region11: #{tpu_custom_call.1} parent=5 // pred_region
        %s178 = ssub.s32 %s14, 1
        // Predicated region
        $region13: #{tpu_custom_call.1} parent=11 // pred_check
          %p179 = pneg %p52
        $region14: #{tpu_custom_call.1} parent=11 // pred_check_branch
          %181 = sbr.rel (%p179) target = $region16
        $region15: #{tpu_custom_call.1} parent=11 // pred_region
          %p182 = scmp.lt.s32.totalorder %s23, 0
          %s183 = scalar_select %p182, %s23, 0
          %s184 = smul.addr %s183, 8
          %s185 = scalar_lea.vmem %s0, %s184
        $region16: #{tpu_custom_call.1} parent=11 // pred_fallthru
          _
        // Predicated region
        $region17: #{tpu_custom_call.1} parent=11 // pred_check
          %p186 = pneg %p73
        $region18: #{tpu_custom_call.1} parent=11 // pred_check_branch
          %188 = sbr.rel (%p186) target = $region20
        $region19: #{tpu_custom_call.1} parent=11 // pred_region
          _
        $region20: #{tpu_custom_call.1} parent=11 // pred_fallthru
          _
        // Predicated region
        $region21: #{tpu_custom_call.1} parent=11 // pred_check
          %p189 = pneg %p94
        $region22: #{tpu_custom_call.1} parent=11 // pred_check_branch
          %191 = sbr.rel (%p189) target = $region24
        $region23: #{tpu_custom_call.1} parent=11 // pred_region
          _
        $region24: #{tpu_custom_call.1} parent=11 // pred_fallthru
          _
        // Predicated region
        $region25: #{tpu_custom_call.1} parent=11 // pred_check
          %p192 = pneg %p115
        $region26: #{tpu_custom_call.1} parent=11 // pred_check_branch
          %194 = sbr.rel (%p192) target = $region28
        $region27: #{tpu_custom_call.1} parent=11 // pred_region
          _
        $region28: #{tpu_custom_call.1} parent=11 // pred_fallthru
          _
        // Predicated region
        $region29: #{tpu_custom_call.1} parent=11 // pred_check
          %p195 = pneg %p136
        $region30: #{tpu_custom_call.1} parent=11 // pred_check_branch
          %197 = sbr.rel (%p195) target = $region32
        $region31: #{tpu_custom_call.1} parent=11 // pred_region
          _
        $region32: #{tpu_custom_call.1} parent=11 // pred_fallthru
          _
      $region12: #{tpu_custom_call.1} parent=5 // pred_fallthru
        _
      %p198 = scmp.lt.s32.totalorder %s14, 4
      // Predicated region
      $region33: #{tpu_custom_call.1} parent=5 // pred_check
        %p199 = pneg %p198
      $region34: #{tpu_custom_call.1} parent=5 // pred_check_branch
        %201 = sbr.rel (%p199) target = $region36
      $region35: #{tpu_custom_call.1} parent=5 // pred_region
        _
      $region36: #{tpu_custom_call.1} parent=5 // pred_fallthru
        _
      %p202 = scmp.le.s32.totalorder 1, %s14
      %p203 = scmp.lt.s32.totalorder %s14, 5
      %p204 = pnand %p202, %p203
      %p205 = pneg %p204
      // Predicated region
      $region37: #{tpu_custom_call.1} parent=5 // pred_check
        _
      $region38: #{tpu_custom_call.1} parent=5 // pred_check_branch
        %207 = sbr.rel (%p204) target = $region40
      $region39: #{tpu_custom_call.1} parent=5 // pred_region
        %s208 = ssub.s32 %s14, 1
        %p209 = scmp.lt.s32.totalorder %s23, 0
        %s210 = scalar_select %p209, %s23, 0
        %s211 = smul.addr %s210, 8
        %s212 = scalar_lea.vmem %s0, %s211
        %p213 = pneg %p52
        %p214 = pneg %p49
        %p215 = pneg %p73
        %p216 = pneg %p70
        %p217 = pneg %p94
        %p218 = pneg %p91
        %p219 = pneg %p115
        %p220 = pneg %p112
        %p221 = pneg %p136
        %p222 = pneg %p133
        %p223 = pneg %p164
        %p224 = pneg %p161
        %s225 = sand.u32 %s151, 1
        %s226 = scalar_lea.sflag [#allocation4], %s225
        %s227 = sand.u32 %s151, 1
        %s228 = smul.addr %s227, 8
        %s229 = scalar_lea.vmem [#allocation3], %s228
        %p230 = scmp.lt.s32.totalorder %s23, 0
        %s231 = scalar_select %p230, %s23, 0
        %s232 = smul.addr %s231, 8
        %s233 = scalar_lea.vmem %s0, %s232
        %p234 = scmp.eq.s32.totalorder %s24, 0
        // Predicated region
        $region41: #{tpu_custom_call.1} parent=39 // pred_check
          %p235 = pneg %p234
        $region42: #{tpu_custom_call.1} parent=39 // pred_check_branch
          %237 = sbr.rel (%p235) target = $region44
        $region43: #{tpu_custom_call.1} parent=39 // pred_region
          %v238 = vld [vmem:[%s233] sm:$0xff]
          %vm239 = vcmask 261120
          %240 = vst.msk [vmem:[#allocation2] sm:$0xff] %vm239, %v238
        $region44: #{tpu_custom_call.1} parent=39 // pred_fallthru
          _
        %v241 = vld [vmem:[#allocation2] sm:$0xff]
        %v242 = vld [vmem:[%s1] sm:$0xff]
        %v243 = vld [vmem:[%s1 + $0x8] sm:$0xff]
        %v244 = vld [vmem:[%s3] sm:$0xff]
        %v245 = vld [vmem:[%s3 + $0x8] sm:$0xff]
        %v246 = vld [vmem:[%s3 + $0x10] sm:$0xff]
        %v247 = vld [vmem:[%s3 + $0x18] sm:$0xff]
        %v248 = vld [vmem:[%s4] sm:$0xff]
        %v249 = vld [vmem:[%s4 + $0x8] sm:$0xff]
        %v250 = vld [vmem:[%s2] sm:$0x1]
        %v252 = vlaneseq
        %v253 = vshrl.u32 %v252, 7
        %v254 = vsub.s32 0, %v253
        %v255 = vrot.slane %v250, %v254
        %vm257 = vcmask 130048
        %v259 = vsel %vm257, %v241, 0
        %261 = vmatprep.subr.mxu0 0.0
        %262 = vmatpush1.msra.mxu0 %v242
        %263 = vmatprep.subr.mxu0 0.0
        %264 = vmatpush1.msra.mxu0 %v243
        %265 = vmatprep.subr.mxu0 0.0
        %266 = vmatpush1.msra.mxu0 0.0
        %267 = vmatprep.subr.mxu0 0.0
        %268 = vmatpush1.msra.mxu0 0.0
        %269 = vmatprep.subr.mxu0 0.0
        %270 = vmatpush1.msra.mxu0 0.0
        %271 = vmatprep.subr.mxu0 0.0
        %272 = vmatpush1.msra.mxu0 0.0
        %273 = vmatprep.subr.mxu0 0.0
        %274 = vmatpush1.msra.mxu0 0.0
        %275 = vmatprep.subr.mxu0 0.0
        %276 = vmatpush1.msra.mxu0 0.0
        %277 = vmatprep.subr.mxu0 0.0
        %278 = vmatpush1.msra.mxu0 0.0
        %279 = vmatprep.subr.mxu0 0.0
        %280 = vmatpush1.msra.mxu0 0.0
        %281 = vmatprep.subr.mxu0 0.0
        %282 = vmatpush1.msra.mxu0 0.0
        %283 = vmatprep.subr.mxu0 0.0
        %284 = vmatpush1.msra.mxu0 0.0
        %285 = vmatprep.subr.mxu0 0.0
        %286 = vmatpush1.msra.mxu0 0.0
        %287 = vmatprep.subr.mxu0 0.0
        %288 = vmatpush1.msra.mxu0 0.0
        %289 = vmatprep.subr.mxu0 0.0
        %290 = vmatpush1.msra.mxu0 0.0
        %291 = vmatprep.subr.mxu0 0.0
        %292 = vmatpush1.msra.mxu0 0.0
        %293 = vmatprep.subr.mxu0 0.0
        %294 = vmatpush1.msra.mxu0 0.0
        %295 = vmatprep.subr.mxu0 0.0
        %296 = vmatpush1.msra.mxu0 0.0
        %297 = vmatprep.subr.mxu0 0.0
        %298 = vmatpush1.msra.mxu0 0.0
        %299 = vmatprep.subr.mxu0 0.0
        %300 = vmatpush1.msra.mxu0 0.0
        %301 = vmatprep.subr.mxu0 0.0
        %302 = vmatpush1.msra.mxu0 0.0
        %303 = vmatprep.subr.mxu0 0.0
        %304 = vmatpush1.msra.mxu0 0.0
        %305 = vmatprep.subr.mxu0 0.0
        %306 = vmatpush1.msra.mxu0 0.0
        %307 = vmatprep.subr.mxu0 0.0
        %308 = vmatpush1.msra.mxu0 0.0
        %309 = vmatprep.subr.mxu0 0.0
        %310 = vmatpush1.msra.mxu0 0.0
        %311 = vmatprep.subr.mxu0 0.0
        %312 = vmatpush1.msra.mxu0 0.0
        %313 = vmatprep.subr.mxu0 0.0
        %314 = vmatpush1.msra.mxu0 0.0
        %315 = vmatprep.subr.mxu0 0.0
        %316 = vmatpush1.msra.mxu0 0.0
        %317 = vmatprep.subr.mxu0 0.0
        %318 = vmatpush1.msra.mxu0 0.0
        %319 = vmatprep.subr.mxu0 0.0
        %320 = vmatpush1.msra.mxu0 0.0
        %321 = vmatprep.subr.mxu0 0.0
        %322 = vmatpush1.msra.mxu0 0.0
        %323 = vmatprep.subr.mxu0 0.0
        %324 = vmatpush1.msra.mxu0 0.0
        %325 = vmatprep.mubr.f32.mxu0 0.0
        %326 = vmatmul.mubr.f32.gmra.mrb[0].mxu0 %v259
        %v327 = vpop.f32.mrb[0].mxu0
        %v328 = vadd.f32 %v255, %v327
        %v329 = vpop.f32.mrb[0].mxu0
        %330 = vdwg.mxu0
        %v331 = vmax.f32 %v328, 0.0
        %vm332 = vcmask 261120
        %v334 = vsel %vm332, %v331, 0
        %336 = vmatprep.subr.mxu0 0.0
        %337 = vmatpush1.msra.mxu0 %v244
        %338 = vmatprep.subr.mxu0 0.0
        %339 = vmatpush1.msra.mxu0 %v245
        %340 = vmatprep.subr.mxu0 0.0
        %341 = vmatpush1.msra.mxu0 %v246
        %342 = vmatprep.subr.mxu0 0.0
        %343 = vmatpush1.msra.mxu0 %v247
        %344 = vmatprep.subr.mxu0 0.0
        %345 = vmatpush1.msra.mxu0 0.0
        %346 = vmatprep.subr.mxu0 0.0
        %347 = vmatpush1.msra.mxu0 0.0
        %348 = vmatprep.subr.mxu0 0.0
        %349 = vmatpush1.msra.mxu0 0.0
        %350 = vmatprep.subr.mxu0 0.0
        %351 = vmatpush1.msra.mxu0 0.0
        %352 = vmatprep.subr.mxu0 0.0
        %353 = vmatpush1.msra.mxu0 0.0
        %354 = vmatprep.subr.mxu0 0.0
        %355 = vmatpush1.msra.mxu0 0.0
        %356 = vmatprep.subr.mxu0 0.0
        %357 = vmatpush1.msra.mxu0 0.0
        %358 = vmatprep.subr.mxu0 0.0
        %359 = vmatpush1.msra.mxu0 0.0
        %360 = vmatprep.subr.mxu0 0.0
        %361 = vmatpush1.msra.mxu0 0.0
        %362 = vmatprep.subr.mxu0 0.0
        %363 = vmatpush1.msra.mxu0 0.0
        %364 = vmatprep.subr.mxu0 0.0
        %365 = vmatpush1.msra.mxu0 0.0
        %366 = vmatprep.subr.mxu0 0.0
        %367 = vmatpush1.msra.mxu0 0.0
        %368 = vmatprep.subr.mxu0 0.0
        %369 = vmatpush1.msra.mxu0 0.0
        %370 = vmatprep.subr.mxu0 0.0
        %371 = vmatpush1.msra.mxu0 0.0
        %372 = vmatprep.subr.mxu0 0.0
        %373 = vmatpush1.msra.mxu0 0.0
        %374 = vmatprep.subr.mxu0 0.0
        %375 = vmatpush1.msra.mxu0 0.0
        %376 = vmatprep.subr.mxu0 0.0
        %377 = vmatpush1.msra.mxu0 0.0
        %378 = vmatprep.subr.mxu0 0.0
        %379 = vmatpush1.msra.mxu0 0.0
        %380 = vmatprep.subr.mxu0 0.0
        %381 = vmatpush1.msra.mxu0 0.0
        %382 = vmatprep.subr.mxu0 0.0
        %383 = vmatpush1.msra.mxu0 0.0
        %384 = vmatprep.subr.mxu0 0.0
        %385 = vmatpush1.msra.mxu0 0.0
        %386 = vmatprep.subr.mxu0 0.0
        %387 = vmatpush1.msra.mxu0 0.0
        %388 = vmatprep.subr.mxu0 0.0
        %389 = vmatpush1.msra.mxu0 0.0
        %390 = vmatprep.subr.mxu0 0.0
        %391 = vmatpush1.msra.mxu0 0.0
        %392 = vmatprep.subr.mxu0 0.0
        %393 = vmatpush1.msra.mxu0 0.0
        %394 = vmatprep.subr.mxu0 0.0
        %395 = vmatpush1.msra.mxu0 0.0
        %396 = vmatprep.subr.mxu0 0.0
        %397 = vmatpush1.msra.mxu0 0.0
        %398 = vmatprep.subr.mxu0 0.0
        %399 = vmatpush1.msra.mxu0 0.0
        %400 = vmatprep.mubr.f32.mxu0 0.0
        %401 = vmatmul.mubr.f32.gmra.mrb[0].mxu0 %v334
        %v402 = vpop.f32.mrb[0].mxu0
        %v403 = vadd.f32 0.0, %v402
        %v404 = vpop.f32.mrb[0].mxu0
        %405 = vdwg.mxu0
        %v406 = vsub.f32 0.0, %v403
        %v407 = vmul.f32 %v406, 0.25
        %409 = vrot.lane.b32.xlu0 %v407, 16
        %v410 = vpop.permute.xlu0 %409
        %v412 = vadd.f32 %v241, %v410
        %414 = vrot.lane.b32.xlu0 %v412, 112
        %v415 = vpop.permute.xlu0 %414
        %v416 = vsel %vm257, %v415, 0
        %418 = vmatprep.subr.mxu0 0.0
        %419 = vmatpush1.msra.mxu0 %v248
        %420 = vmatprep.subr.mxu0 0.0
        %421 = vmatpush1.msra.mxu0 %v249
        %422 = vmatprep.subr.mxu0 0.0
        %423 = vmatpush1.msra.mxu0 0.0
        %424 = vmatprep.subr.mxu0 0.0
        %425 = vmatpush1.msra.mxu0 0.0
        %426 = vmatprep.subr.mxu0 0.0
        %427 = vmatpush1.msra.mxu0 0.0
        %428 = vmatprep.subr.mxu0 0.0
        %429 = vmatpush1.msra.mxu0 0.0
        %430 = vmatprep.subr.mxu0 0.0
        %431 = vmatpush1.msra.mxu0 0.0
        %432 = vmatprep.subr.mxu0 0.0
        %433 = vmatpush1.msra.mxu0 0.0
        %434 = vmatprep.subr.mxu0 0.0
        %435 = vmatpush1.msra.mxu0 0.0
        %436 = vmatprep.subr.mxu0 0.0
        %437 = vmatpush1.msra.mxu0 0.0
        %438 = vmatprep.subr.mxu0 0.0
        %439 = vmatpush1.msra.mxu0 0.0
        %440 = vmatprep.subr.mxu0 0.0
        %441 = vmatpush1.msra.mxu0 0.0
        %442 = vmatprep.subr.mxu0 0.0
        %443 = vmatpush1.msra.mxu0 0.0
        %444 = vmatprep.subr.mxu0 0.0
        %445 = vmatpush1.msra.mxu0 0.0
        %446 = vmatprep.subr.mxu0 0.0
        %447 = vmatpush1.msra.mxu0 0.0
        %448 = vmatprep.subr.mxu0 0.0
        %449 = vmatpush1.msra.mxu0 0.0
        %450 = vmatprep.subr.mxu0 0.0
        %451 = vmatpush1.msra.mxu0 0.0
        %452 = vmatprep.subr.mxu0 0.0
        %453 = vmatpush1.msra.mxu0 0.0
        %454 = vmatprep.subr.mxu0 0.0
        %455 = vmatpush1.msra.mxu0 0.0
        %456 = vmatprep.subr.mxu0 0.0
        %457 = vmatpush1.msra.mxu0 0.0
        %458 = vmatprep.subr.mxu0 0.0
        %459 = vmatpush1.msra.mxu0 0.0
        %460 = vmatprep.subr.mxu0 0.0
        %461 = vmatpush1.msra.mxu0 0.0
        %462 = vmatprep.subr.mxu0 0.0
        %463 = vmatpush1.msra.mxu0 0.0
        %464 = vmatprep.subr.mxu0 0.0
        %465 = vmatpush1.msra.mxu0 0.0
        %466 = vmatprep.subr.mxu0 0.0
        %467 = vmatpush1.msra.mxu0 0.0
        %468 = vmatprep.subr.mxu0 0.0
        %469 = vmatpush1.msra.mxu0 0.0
        %470 = vmatprep.subr.mxu0 0.0
        %471 = vmatpush1.msra.mxu0 0.0
        %472 = vmatprep.subr.mxu0 0.0
        %473 = vmatpush1.msra.mxu0 0.0
        %474 = vmatprep.subr.mxu0 0.0
        %475 = vmatpush1.msra.mxu0 0.0
        %476 = vmatprep.subr.mxu0 0.0
        %477 = vmatpush1.msra.mxu0 0.0
        %478 = vmatprep.subr.mxu0 0.0
        %479 = vmatpush1.msra.mxu0 0.0
        %480 = vmatprep.subr.mxu0 0.0
        %481 = vmatpush1.msra.mxu0 0.0
        %482 = vmatprep.mubr.f32.mxu0 0.0
        %483 = vmatmul.mubr.f32.gmra.mrb[0].mxu0 %v416
        %v484 = vpop.f32.mrb[0].mxu0
        %v485 = vadd.f32 0.0, %v484
        %v486 = vpop.f32.mrb[0].mxu0
        %487 = vdwg.mxu0
        %v488 = vmul.f32 %v485, 0.25
        %v489 = vadd.f32 %v241, %v488
        %490 = vst.msk [vmem:[#allocation2] sm:$0xff] %vm257, %v489
        %vm491 = vcmask 261248
        %492 = vst.msk [vmem:[#allocation2] sm:$0xff] %vm491, %v412
        %493 = vst.msk [vmem:[%s229] sm:$0xff] %vm257, %v489
        %494 = vst.msk [vmem:[%s229] sm:$0xff] %vm491, %v412
        %s495 = sand.u32 %s151, 1
        %s496 = scalar_lea.sflag [#allocation4], %s495
        %s497 = sand.u32 %s151, 1
        %s498 = smul.addr %s497, 8
        %s499 = scalar_lea.vmem [#allocation3], %s498
        // Predicated region
        $region45: #{tpu_custom_call.1} parent=39 // pred_check
          %p500 = pneg %p161
        $region46: #{tpu_custom_call.1} parent=39 // pred_check_branch
          %502 = sbr.rel (%p500) target = $region48
        $region47: #{tpu_custom_call.1} parent=39 // pred_region
          %s504 = ssub.s32 128, 128
          %505 = vsyncadd %s496, %s504
          %s506 = sadd.s32 %s23, %s24
          %s507 = smul.addr %s506, 128
          %s508 = scalar_lea.hbm %s5, %s507
          %s510 = sshll.u32 %s499, 4
          %s511 = int_to_ptr.vmem [resolvable:$true] %s510
          %513 = dma.vmem_to_hbm [thread:$0]  %s511, 128, %s508, %s496
        $region48: #{tpu_custom_call.1} parent=39 // pred_fallthru
          _
      $region40: #{tpu_custom_call.1} parent=5 // pred_fallthru
        _
      %p514 = scmp.le.s32.totalorder 2, %s14
      // Predicated region
      $region49: #{tpu_custom_call.1} parent=5 // pred_check
        %p515 = pneg %p514
      $region50: #{tpu_custom_call.1} parent=5 // pred_check_branch
        %517 = sbr.rel (%p515) target = $region52
      $region51: #{tpu_custom_call.1} parent=5 // pred_region
        %s518 = ssub.s32 %s14, 2
        // Predicated region
        $region53: #{tpu_custom_call.1} parent=51 // pred_check
          %p519 = pneg %p167
        $region54: #{tpu_custom_call.1} parent=51 // pred_check_branch
          %521 = sbr.rel (%p519) target = $region56
        $region55: #{tpu_custom_call.1} parent=51 // pred_region
          %s522 = sand.u32 %s152, 1
          %s523 = scalar_lea.sflag [#allocation4], %s522
          %s524 = sand.u32 %s152, 1
          %s525 = smul.addr %s524, 8
          %s526 = scalar_lea.vmem [#allocation3], %s525
          %527 = dma.done %s523, 128
        $region56: #{tpu_custom_call.1} parent=51 // pred_fallthru
          _
      $region52: #{tpu_custom_call.1} parent=5 // pred_fallthru
        _
    $region6: #{tpu_custom_call.1} parent=1 // loop_footer
      %s18 = sadd.s32 1, %s14
    $region7: #{tpu_custom_call.1} parent=1 // loop_footer_branch
      %13 = sbr.rel target = $region3
    $region8: #{tpu_custom_call.1} parent=1 // loop_exit
      _
    %528 = vsyncpa [#allocation4], 1
    %s529 = scalar_lea.sflag [#allocation4], 1
    %530 = vsyncpa %s529, 1

</llo_original>
